<compile_context>
chip_gen: v7x
topology: tpu7x:2x2x1
jax: 0.10.0
libtpu: 0.0.40
codegen_flags: <defaults>
</compile_context>

<pallas_src>
import functools

import jax
import jax.numpy as jnp
from jax import lax
from jax.experimental import pallas as pl
from jax.experimental.pallas import tpu as pltpu


def _l2_normalize(x):
    # F.normalize(dim=1): x / max(||x||, 1e-12)  ==  x * rsqrt(max(||x||^2, 1e-24))
    ss = jnp.sum(x * x, axis=1, keepdims=True)
    return x * lax.rsqrt(jnp.maximum(ss, 1e-24))


def _ntxent_kernel(q_ref, ko_ref, ks_ref, loss_ref, *opt_logits_ref,
                   temperature, block_rows, batch):
    """One (view h, row-tile s) step.

    q_ref : (tm, D)  query rows (z0 rows if h==0 else z1 rows)
    ko_ref: (B, D)   "other view" keys (z1 if h==0 else z0)  -> left logits block
    ks_ref: (B, D)   "same view"  keys (z0 if h==0 else z1)  -> right logits block (diag removed)
    loss_ref:   (tm, 1)       per-row cross-entropy
    logits_ref: (tm, 2B-1)    optional, torch layout [other | same-without-diag]
    """
    b = batch
    tm = block_rows
    s = pl.program_id(1)
    inv_t = 1.0 / temperature  # Python float -> literal, never a captured constant

    # --- normalize (f32 math, rsqrt on the EUP; hidden under the MXU) ----------------
    qn = _l2_normalize(q_ref[...].astype(jnp.float32))          # (tm, D)
    kon = _l2_normalize(ko_ref[...].astype(jnp.float32))        # (B, D)
    ksn = _l2_normalize(ks_ref[...].astype(jnp.float32))        # (B, D)

    # --- two bf16 matmuls on the MXU, f32 accumulate (no concat copy, no transposes) --
    qb = qn.astype(jnp.bfloat16)
    dn = (((1,), (1,)), ((), ()))                                # contract D of both operands
    other = lax.dot_general(qb, kon.astype(jnp.bfloat16), dimension_numbers=dn,
                            preferred_element_type=jnp.float32) * inv_t   # (tm, B)  l01 / l10
    same = lax.dot_general(qb, ksn.astype(jnp.bfloat16), dimension_numbers=dn,
                           preferred_element_type=jnp.float32) * inv_t    # (tm, B)  l00 / l11

    # same-view block with its diagonal column removed (torch's logits_xx[~diag].view):
    # result[r, c] = same[r, c] if c < (global row) else same[r, c + 1]
    same_lo = same[:, :b - 1]                                    # same[:, :B-1]
    same_hi = same[:, 1:]                                        # same[:, 1:]
    row = lax.broadcasted_iota(jnp.int32, (tm, b - 1), 0)
    col = lax.broadcasted_iota(jnp.int32, (tm, b - 1), 1)
    dcol = s * tm + row                                          # diag column per row
    right = jnp.where(col < dcol, same_lo, same_hi)              # (tm, B-1)

    # --- per-row logsumexp from the two halves (no (tm, 2B-1) concat) ----------------
    m = jnp.maximum(jnp.max(other, axis=1, keepdims=True),
                    jnp.max(right, axis=1, keepdims=True))
    se = (jnp.sum(jnp.exp(other - m), axis=1, keepdims=True)
          + jnp.sum(jnp.exp(right - m), axis=1, keepdims=True))
    lse = m + jnp.log(se)

    # --- target logit computed directly: O(tm*D) instead of a masked (tm,B) reduce ---
    start = pl.multiple_of(s * tm, tm)
    ko_q = _l2_normalize(ko_ref[pl.ds(start, tm), :].astype(jnp.float32))  # rows of this tile
    tgt = jnp.sum(qn * ko_q, axis=1, keepdims=True) * inv_t

    loss_ref[...] = lse - tgt

    if opt_logits_ref:
        logits_ref = opt_logits_ref[0]
        logits_ref[:, :b] = other.astype(logits_ref.dtype)       # lane-aligned for B % 128 == 0
        logits_ref[:, b:] = right.astype(logits_ref.dtype)


def _pick_block_rows(b, d):
    """Row-tile size: keep the per-step working set well under v7x's 64 MiB VMEM."""
    if b <= 256:
        return b
    for tm in (512, 256, 128, 64, 32, 16, 8):
        if b % tm:
            continue
        # rough bytes: key blocks (double-buffered f32 + f32/bf16 normalized temps)
        #              + scores/right temps + double-buffered output tiles
        est = 28 * b * d + 24 * tm * b
        if est <= 24 * 1024 * 1024:
            return tm
    return b


def ntxent_sim_loss(z0, z1, temperature=0.5, return_logits=True,
                    logits_dtype=jnp.float32, block_rows=None):
    """NTXentBase.forward_sim_loss (dim_norm=False, gather_distributed=False).

    Returns (per-row loss (2B,), logits (2B, 2B-1) or None, labels (2B,)).
    B should be a multiple of 8 (TPU sublane granularity) for tiled shapes.
    """
    b, d = z0.shape
    tm = block_rows if block_rows is not None else _pick_block_rows(b, d)
    n_sub = b // tm
    zs = jnp.stack([z0, z1], axis=0)                             # (2, B, D)

    kernel = functools.partial(_ntxent_kernel, temperature=float(temperature),
                               block_rows=tm, batch=b)

    out_shape = [jax.ShapeDtypeStruct((2 * b, 1), jnp.float32)]
    out_specs = [pl.BlockSpec((tm, 1), lambda h, s: (h * n_sub + s, 0))]
    if return_logits:
        out_shape.append(jax.ShapeDtypeStruct((2 * b, 2 * b - 1), logits_dtype))
        out_specs.append(pl.BlockSpec((tm, 2 * b - 1), lambda h, s: (h * n_sub + s, 0)))

    outs = pl.pallas_call(
        kernel,
        out_shape=out_shape,
        grid=(2, n_sub),
        in_specs=[
            # query row-tile from view h
            pl.BlockSpec((None, tm, d), lambda h, s: (h, s, 0)),
            # full "other view" keys (index_map constant in s -> DMA'd once per view)
            pl.BlockSpec((None, b, d), lambda h, s: (1 - h, 0, 0)),
            # full "same view" keys
            pl.BlockSpec((None, b, d), lambda h, s: (h, 0, 0)),
        ],
        out_specs=out_specs,
        compiler_params=pltpu.CompilerParams(
            dimension_semantics=("parallel", "parallel"),
            vmem_limit_bytes=48 * 1024 * 1024,
        ),
    )(zs, zs, zs)

    loss = outs[0][:, 0]
    logits = outs[1] if return_logits else None
    labels = jnp.tile(jnp.arange(b, dtype=jnp.int32), 2)         # rank = 0 offset
    return loss, logits, labels


def _reference(z0, z1, t):
    """Pure-JAX f32 re-implementation of forward_sim_loss (sanity check)."""
    b = z0.shape[0]
    z0n = z0 / jnp.maximum(jnp.linalg.norm(z0, axis=1, keepdims=True), 1e-12)
    z1n = z1 / jnp.maximum(jnp.linalg.norm(z1, axis=1, keepdims=True), 1e-12)
    l00 = z0n @ z0n.T / t
    l01 = z0n @ z1n.T / t
    l10 = z1n @ z0n.T / t
    l11 = z1n @ z1n.T / t
    off = ~jnp.eye(b, dtype=bool)
    l00n = l00[off].reshape(b, b - 1)
    l11n = l11[off].reshape(b, b - 1)
    logits = jnp.concatenate(
        [jnp.concatenate([l01, l00n], axis=1),
         jnp.concatenate([l10, l11n], axis=1)], axis=0)
    labels = jnp.tile(jnp.arange(b), 2)
    lse = jax.nn.logsumexp(logits, axis=1)
    loss = lse - logits[jnp.arange(2 * b), labels]
    return loss, logits, labels


if __name__ == "__main__":
    key = jax.random.PRNGKey(0)
    batch, hidden = 8, 32
    k0, k1 = jax.random.split(key)
    z0 = jax.random.normal(k0, (batch, hidden), jnp.float32)
    z1 = jax.random.normal(k1, (batch, hidden), jnp.float32)

    # full variant (loss + torch-layout logits) and loss-only variant
    loss, logits, labels = ntxent_sim_loss(z0, z1, temperature=0.5, return_logits=True)
    loss_only = ntxent_sim_loss(z0, z1, temperature=0.5, return_logits=False)[0]
    mean_loss = loss.mean()  # forward() does loss.mean(dim=0)
    jax.block_until_ready((loss, logits, labels, mean_loss, loss_only))

    ref_loss, ref_logits, ref_labels = _reference(z0, z1, 0.5)
    # bf16 MXU inputs with f32 accumulation -> loosened tolerance vs. the f32 reference
    assert jnp.allclose(loss, ref_loss, atol=2e-2, rtol=2e-2)
    assert jnp.allclose(logits, ref_logits, atol=2e-2, rtol=2e-2)
    assert jnp.allclose(loss_only, loss, atol=1e-5, rtol=1e-5)
    assert jnp.array_equal(labels, ref_labels)

    print("KERNEL_OK")
</pallas_src>

<mosaic_0001>
module attributes {stable_mosaic.version = 11 : i64} {
  func.func @_ntxent_kernel(%arg0: i32, %arg1: i32, %arg2: memref<1x8x32xf32, #tpu.memory_space<vmem>>, %arg3: memref<1x8x32xf32, #tpu.memory_space<vmem>>, %arg4: memref<1x8x32xf32, #tpu.memory_space<vmem>>, %arg5: memref<8x1xf32, #tpu.memory_space<vmem>>, %arg6: memref<8x15xf32, #tpu.memory_space<vmem>>) attributes {dimension_semantics = [#tpu.dimension_semantics<parallel>, #tpu.dimension_semantics<parallel>], iteration_bounds = array<i64: 2, 1>, scalar_prefetch = 0 : i64, scratch_operands = 0 : i64, tpu.core_type = #tpu.core_type<tc>, window_params = [{transform_indices = @transform_0, window_bounds = array<i64: 1, 8, 32>}, {transform_indices = @transform_1, window_bounds = array<i64: 1, 8, 32>}, {transform_indices = @transform_2, window_bounds = array<i64: 1, 8, 32>}, {transform_indices = @transform_3, window_bounds = array<i64: 8, 1>}, {transform_indices = @transform_4, window_bounds = array<i64: 8, 15>}]} {
    %c0 = arith.constant 0 : index
    %c0_0 = arith.constant 0 : index
    %c0_1 = arith.constant 0 : index
    %0 = vector.load %arg2[%c0, %c0_0, %c0_1] : memref<1x8x32xf32, #tpu.memory_space<vmem>>, vector<1x8x32xf32>
    %1 = vector.shape_cast %0 : vector<1x8x32xf32> to vector<8x32xf32>
    %2 = arith.mulf %1, %1 : vector<8x32xf32>
    %cst = arith.constant dense<0.000000e+00> : vector<8xf32>
    %3 = vector.multi_reduction <add>, %2, %cst [1] : vector<8x32xf32> to vector<8xf32>
    %4 = vector.shape_cast %3 : vector<8xf32> to vector<8x1xf32>
    %cst_2 = arith.constant 1.000000e-24 : f32
    %5 = vector.broadcast %cst_2 : f32 to vector<8x1xf32>
    %6 = arith.maximumf %4, %5 : vector<8x1xf32>
    %7 = math.rsqrt %6 : vector<8x1xf32>
    %8 = vector.broadcast %7 : vector<8x1xf32> to vector<8x32xf32>
    %9 = arith.mulf %1, %8 : vector<8x32xf32>
    %c0_3 = arith.constant 0 : index
    %c0_4 = arith.constant 0 : index
    %c0_5 = arith.constant 0 : index
    %10 = vector.load %arg3[%c0_3, %c0_4, %c0_5] : memref<1x8x32xf32, #tpu.memory_space<vmem>>, vector<1x8x32xf32>
    %11 = vector.shape_cast %10 : vector<1x8x32xf32> to vector<8x32xf32>
    %12 = arith.mulf %11, %11 : vector<8x32xf32>
    %cst_6 = arith.constant dense<0.000000e+00> : vector<8xf32>
    %13 = vector.multi_reduction <add>, %12, %cst_6 [1] : vector<8x32xf32> to vector<8xf32>
    %14 = vector.shape_cast %13 : vector<8xf32> to vector<8x1xf32>
    %cst_7 = arith.constant 1.000000e-24 : f32
    %15 = vector.broadcast %cst_7 : f32 to vector<8x1xf32>
    %16 = arith.maximumf %14, %15 : vector<8x1xf32>
    %17 = math.rsqrt %16 : vector<8x1xf32>
    %18 = vector.broadcast %17 : vector<8x1xf32> to vector<8x32xf32>
    %19 = arith.mulf %11, %18 : vector<8x32xf32>
    %c0_8 = arith.constant 0 : index
    %c0_9 = arith.constant 0 : index
    %c0_10 = arith.constant 0 : index
    %20 = vector.load %arg4[%c0_8, %c0_9, %c0_10] : memref<1x8x32xf32, #tpu.memory_space<vmem>>, vector<1x8x32xf32>
    %21 = vector.shape_cast %20 : vector<1x8x32xf32> to vector<8x32xf32>
    %22 = arith.mulf %21, %21 : vector<8x32xf32>
    %cst_11 = arith.constant dense<0.000000e+00> : vector<8xf32>
    %23 = vector.multi_reduction <add>, %22, %cst_11 [1] : vector<8x32xf32> to vector<8xf32>
    %24 = vector.shape_cast %23 : vector<8xf32> to vector<8x1xf32>
    %cst_12 = arith.constant 1.000000e-24 : f32
    %25 = vector.broadcast %cst_12 : f32 to vector<8x1xf32>
    %26 = arith.maximumf %24, %25 : vector<8x1xf32>
    %27 = math.rsqrt %26 : vector<8x1xf32>
    %28 = vector.broadcast %27 : vector<8x1xf32> to vector<8x32xf32>
    %29 = arith.mulf %21, %28 : vector<8x32xf32>
    %30 = arith.truncf %9 : vector<8x32xf32> to vector<8x32xbf16>
    %31 = arith.truncf %19 : vector<8x32xf32> to vector<8x32xbf16>
    %cst_13 = arith.constant dense<0.000000e+00> : vector<8x8xf32>
    %32 = tpu.matmul %30, %31, %cst_13 {dimension_numbers = #tpu.dot_dimension_numbers<[1], [1], [0], [0], [0, 0, 1, 0], [], []>} : vector<8x32xbf16>, vector<8x32xbf16>, vector<8x8xf32> -> vector<8x8xf32>
    %cst_14 = arith.constant 2.000000e+00 : f32
    %33 = vector.broadcast %cst_14 : f32 to vector<8x8xf32>
    %34 = arith.mulf %32, %33 : vector<8x8xf32>
    %35 = arith.truncf %29 : vector<8x32xf32> to vector<8x32xbf16>
    %cst_15 = arith.constant dense<0.000000e+00> : vector<8x8xf32>
    %36 = tpu.matmul %30, %35, %cst_15 {dimension_numbers = #tpu.dot_dimension_numbers<[1], [1], [0], [0], [0, 0, 1, 0], [], []>} : vector<8x32xbf16>, vector<8x32xbf16>, vector<8x8xf32> -> vector<8x8xf32>
    %cst_16 = arith.constant 2.000000e+00 : f32
    %37 = vector.broadcast %cst_16 : f32 to vector<8x8xf32>
    %38 = arith.mulf %36, %37 : vector<8x8xf32>
    %39 = vector.extract_strided_slice %38 {offsets = [0, 0], sizes = [8, 7], strides = [1, 1]} : vector<8x8xf32> to vector<8x7xf32>
    %40 = vector.extract_strided_slice %38 {offsets = [0, 1], sizes = [8, 7], strides = [1, 1]} : vector<8x8xf32> to vector<8x7xf32>
    %41 = tpu.iota {dimensions = array<i32: 0>} : vector<8x7xi32>
    %42 = tpu.iota {dimensions = array<i32: 1>} : vector<8x7xi32>
    %c8_i32 = arith.constant 8 : i32
    %43 = arith.muli %arg1, %c8_i32 : i32
    %44 = vector.broadcast %43 : i32 to vector<8x7xi32>
    %45 = arith.addi %44, %41 : vector<8x7xi32>
    %46 = arith.cmpi slt, %42, %45 : vector<8x7xi32>
    %47 = arith.select %46, %39, %40 : vector<8x7xi1>, vector<8x7xf32>
    %cst_17 = arith.constant dense<0xFF800000> : vector<8xf32>
    %48 = vector.multi_reduction <maximumf>, %34, %cst_17 [1] : vector<8x8xf32> to vector<8xf32>
    %49 = vector.shape_cast %48 : vector<8xf32> to vector<8x1xf32>
    %cst_18 = arith.constant dense<0xFF800000> : vector<8xf32>
    %50 = vector.multi_reduction <maximumf>, %47, %cst_18 [1] : vector<8x7xf32> to vector<8xf32>
    %51 = vector.shape_cast %50 : vector<8xf32> to vector<8x1xf32>
    %52 = arith.maximumf %49, %51 : vector<8x1xf32>
    %53 = vector.broadcast %52 : vector<8x1xf32> to vector<8x8xf32>
    %54 = arith.subf %34, %53 : vector<8x8xf32>
    %55 = math.exp %54 : vector<8x8xf32>
    %cst_19 = arith.constant dense<0.000000e+00> : vector<8xf32>
    %56 = vector.multi_reduction <add>, %55, %cst_19 [1] : vector<8x8xf32> to vector<8xf32>
    %57 = vector.shape_cast %56 : vector<8xf32> to vector<8x1xf32>
    %58 = vector.broadcast %52 : vector<8x1xf32> to vector<8x7xf32>
    %59 = arith.subf %47, %58 : vector<8x7xf32>
    %60 = math.exp %59 : vector<8x7xf32>
    %cst_20 = arith.constant dense<0.000000e+00> : vector<8xf32>
    %61 = vector.multi_reduction <add>, %60, %cst_20 [1] : vector<8x7xf32> to vector<8xf32>
    %62 = vector.shape_cast %61 : vector<8xf32> to vector<8x1xf32>
    %63 = arith.addf %57, %62 : vector<8x1xf32>
    %64 = math.log %63 : vector<8x1xf32>
    %65 = arith.addf %52, %64 : vector<8x1xf32>
    %c8_i32_21 = arith.constant 8 : i32
    %66 = arith.muli %arg1, %c8_i32_21 : i32
    %67 = tpu.assume_multiple %66, 8 : i32
    %c0_22 = arith.constant 0 : index
    %68 = arith.index_cast %67 : i32 to index
    %c0_23 = arith.constant 0 : index
    %69 = vector.load %arg3[%c0_22, %68, %c0_23] : memref<1x8x32xf32, #tpu.memory_space<vmem>>, vector<1x8x32xf32>
    %70 = vector.shape_cast %69 : vector<1x8x32xf32> to vector<8x32xf32>
    %71 = arith.mulf %70, %70 : vector<8x32xf32>
    %cst_24 = arith.constant dense<0.000000e+00> : vector<8xf32>
    %72 = vector.multi_reduction <add>, %71, %cst_24 [1] : vector<8x32xf32> to vector<8xf32>
    %73 = vector.shape_cast %72 : vector<8xf32> to vector<8x1xf32>
    %cst_25 = arith.constant 1.000000e-24 : f32
    %74 = vector.broadcast %cst_25 : f32 to vector<8x1xf32>
    %75 = arith.maximumf %73, %74 : vector<8x1xf32>
    %76 = math.rsqrt %75 : vector<8x1xf32>
    %77 = vector.broadcast %76 : vector<8x1xf32> to vector<8x32xf32>
    %78 = arith.mulf %70, %77 : vector<8x32xf32>
    %79 = arith.mulf %9, %78 : vector<8x32xf32>
    %cst_26 = arith.constant dense<0.000000e+00> : vector<8xf32>
    %80 = vector.multi_reduction <add>, %79, %cst_26 [1] : vector<8x32xf32> to vector<8xf32>
    %81 = vector.shape_cast %80 : vector<8xf32> to vector<8x1xf32>
    %cst_27 = arith.constant 2.000000e+00 : f32
    %82 = vector.broadcast %cst_27 : f32 to vector<8x1xf32>
    %83 = arith.mulf %81, %82 : vector<8x1xf32>
    %84 = arith.subf %65, %83 : vector<8x1xf32>
    %c0_28 = arith.constant 0 : index
    %c0_29 = arith.constant 0 : index
    %85 = vector.load %arg5[%c0_28, %c0_29] : memref<8x1xf32, #tpu.memory_space<vmem>>, vector<8x1xf32>
    tpu.vector_store %arg5[%c0_28, %c0_29], %84 {strides = array<i32>} : memref<8x1xf32, #tpu.memory_space<vmem>>, vector<8x1xf32>,
    %c0_30 = arith.constant 0 : index
    %c0_31 = arith.constant 0 : index
    %86 = vector.load %arg6[%c0_30, %c0_31] : memref<8x15xf32, #tpu.memory_space<vmem>>, vector<8x8xf32>
    tpu.vector_store %arg6[%c0_30, %c0_31], %34 {strides = array<i32>} : memref<8x15xf32, #tpu.memory_space<vmem>>, vector<8x8xf32>,
    %c0_32 = arith.constant 0 : index
    %c8 = arith.constant 8 : index
    %87 = vector.load %arg6[%c0_32, %c8] : memref<8x15xf32, #tpu.memory_space<vmem>>, vector<8x7xf32>
    tpu.vector_store %arg6[%c0_32, %c8], %47 {strides = array<i32>} : memref<8x15xf32, #tpu.memory_space<vmem>>, vector<8x7xf32>,
    return
  }
  func.func @transform_0(%arg0: i32, %arg1: i32) -> (i32, i32, i32) {
    %c0_i32 = arith.constant 0 : i32
    %c0_i32_0 = arith.constant 0 : i32
    return %arg0, %arg1, %c0_i32 : i32, i32, i32
  }
  func.func @transform_1(%arg0: i32, %arg1: i32) -> (i32, i32, i32) {
    %c1_i32 = arith.constant 1 : i32
    %0 = arith.subi %c1_i32, %arg0 : i32
    %c0_i32 = arith.constant 0 : i32
    %c0_i32_0 = arith.constant 0 : i32
    %c0_i32_1 = arith.constant 0 : i32
    return %0, %c0_i32, %c0_i32_0 : i32, i32, i32
  }
  func.func @transform_2(%arg0: i32, %arg1: i32) -> (i32, i32, i32) {
    %c0_i32 = arith.constant 0 : i32
    %c0_i32_0 = arith.constant 0 : i32
    %c0_i32_1 = arith.constant 0 : i32
    return %arg0, %c0_i32, %c0_i32_0 : i32, i32, i32
  }
  func.func @transform_3(%arg0: i32, %arg1: i32) -> (i32, i32) {
    %c1_i32 = arith.constant 1 : i32
    %0 = arith.muli %arg0, %c1_i32 : i32
    %1 = arith.addi %0, %arg1 : i32
    %c0_i32 = arith.constant 0 : i32
    %c0_i32_0 = arith.constant 0 : i32
    return %1, %c0_i32 : i32, i32
  }
  func.func @transform_4(%arg0: i32, %arg1: i32) -> (i32, i32) {
    %c1_i32 = arith.constant 1 : i32
    %0 = arith.muli %arg0, %c1_i32 : i32
    %1 = arith.addi %0, %arg1 : i32
    %c0_i32 = arith.constant 0 : i32
    %c0_i32_0 = arith.constant 0 : i32
    return %1, %c0_i32 : i32, i32
  }
}

</mosaic_0001>

<llo_original>
// kernel: tpu_custom_call.1
$region0: #{tpu_custom_call.1}
  #allocation0 [shape = 'u32[]', space=smem, size = 0x4, offset = 0x4, fixed_abs, tag = 'smem constant byte address 0x4 - core index']
  #allocation1 [shape = 'u32[144,128]{1,0:T(1,128)}', space=vmem, size = 0x12000, scoped, tag = 'internal scratch']
  %s0 = inlined_call_operand.hbm [shape: f32[2,8,32], index: 0, kind: input, shape index: {}]
  %s1 = inlined_call_operand.hbm [shape: f32[2,8,32], index: 1, kind: input, shape index: {}]
  %s2 = inlined_call_operand.hbm [shape: f32[2,8,32], index: 2, kind: input, shape index: {}]
  %s3 = inlined_call_operand.vmem [shape: f32[16,1], index: 3, kind: output, shape index: {0}]
  %s4 = inlined_call_operand.hbm [shape: f32[16,15], index: 4, kind: output, shape index: {1}]
  %5 = xla_tuple %s3, %s4
  %s6 = sld [smem:[#allocation0]]
  $region65: #{tpu_custom_call.1} parent=0
    _
  %s8 = ssub.s32 1, %s6
  %s9 = scalar_select 0, %s8, %s6
  $region1: #{tpu_custom_call.1} parent=0
    #allocation2 [shape = 'u8[8192]{0}', space=vmem, size = 0x2000, scoped, tag = 'input window, operand 0']
    #allocation3 [shape = 's32[2]{0}', space=sflag, size = 0x8, scoped, tag = 'scoped memory for tpu_custom_call.1']
    #allocation4 [shape = 's32[2]{0}', space=sflag, size = 0x8, scoped, tag = 'scoped memory for tpu_custom_call.1']
    #allocation5 [shape = 'u8[8192]{0}', space=vmem, size = 0x2000, scoped, tag = 'input window, operand 1']
    #allocation6 [shape = 's32[2]{0}', space=sflag, size = 0x8, scoped, tag = 'scoped memory for tpu_custom_call.1']
    #allocation7 [shape = 'u8[8192]{0}', space=vmem, size = 0x2000, scoped, tag = 'input window, operand 2']
    #allocation8 [shape = 'u8[8192]{0}', space=vmem, size = 0x2000, scoped, tag = 'output window, operand 1']
    %10 = vsyncpa [#allocation3], 0
    %s11 = scalar_lea.sflag [#allocation3], 1
    %12 = vsyncpa %s11, 0
    %13 = vsyncpa [#allocation6], 0
    %s14 = scalar_lea.sflag [#allocation6], 1
    %15 = vsyncpa %s14, 0
    %16 = vsyncpa [#allocation4], 0
    %s17 = scalar_lea.sflag [#allocation4], 1
    %18 = vsyncpa %s17, 0
    loop: start=0, step=1, limit=4
    $region2: #{tpu_custom_call.1} parent=1 // loop_pre_header
      _
    $region3: #{tpu_custom_call.1} parent=1 // loop_header
      %s20 = sphi 0, %s24
      %p21 = scmp.ge.s32.totalorder %s20, 4
      %s27 = sphi 0, %s39
      %s28 = sphi 0, %s35
      %s29 = sphi 0, %s27
      %s30 = sphi 0, %s28
      %s31 = sphi 0, %s29
      %s32 = sphi 0, %s30
      %s44 = sphi 0, %s46
      %s47 = sphi 0, %s44
      %s48 = sphi 0, %s47
      %s64 = sphi 0, %s48
      %s72 = sphi 0, %s74
      %s75 = sphi 0, %s72
      %s76 = sphi 0, %s75
      %s92 = sphi 0, %s76
      %s98 = sphi 0, %s100
      %s101 = sphi 0, %s98
      %s102 = sphi 0, %s101
      %s118 = sphi 0, %s102
      %s126 = sphi 0, %s128
      %s129 = sphi 0, %s126
      %s130 = sphi 0, %s129
      %s146 = sphi 0, %s130
      %s154 = sphi 0, %s156
      %s157 = sphi 0, %s154
      %s158 = sphi 0, %s157
      %s174 = sphi 0, %s158
    $region4: #{tpu_custom_call.1} parent=1 // loop_header_branch
      %23 = sbr.rel (%p21) target = $region8
    $region5: #{tpu_custom_call.1} parent=1 // loop_body
      %s25 = ssub.s32 %s20, 1
      %s26 = ssub.s32 %s20, 2
      %s33 = sadd.s32 1, %s28
      %p34 = scmp.ge.s32.totalorder %s33, 1
      %s35 = scalar_select %p34, 0, %s33
      %s36 = sadd.s32 1, %s27
      %s37 = scalar_select %p34, %s36, %s27
      %p38 = scmp.ge.s32.totalorder %s37, 2
      %s39 = scalar_select %p38, 0, %s37
      %s40 = ssub.s32 %s27, %s39
      %s41 = ssub.s32 %s28, %s35
      %s42 = sor.u32 %s40, %s41
      %p43 = scmp.eq.s32.totalorder %s42, 0
      %s45 = sadd.s32 %s44, 1
      %s46 = scalar_select %p43, %s44, %s45
      %p49 = pneg %p43
      %p50 = scmp.eq.s32.totalorder %s20, 1
      %p51 = por %p49, %p50
      %p52 = scmp.ne.s32.totalorder %s44, %s47
      %p53 = scmp.eq.s32.totalorder %s20, 0
      %p54 = por %p52, %p53
      %p55 = scmp.ne.s32.totalorder %s44, %s47
      %p56 = scmp.eq.s32.totalorder %s25, 1
      %p57 = por %p55, %p56
      %p58 = scmp.ne.s32.totalorder %s47, %s48
      %p59 = scmp.eq.s32.totalorder %s25, 0
      %p60 = por %p58, %p59
      %p61 = scmp.ne.s32.totalorder %s47, %s48
      %p62 = scmp.eq.s32.totalorder %s26, 1
      %p63 = por %p61, %p62
      %p65 = scmp.ne.s32.totalorder %s48, %s64
      %p66 = scmp.eq.s32.totalorder %s26, 0
      %p67 = por %p65, %p66
      %s68 = ssub.s32 1, %s27
      %s69 = ssub.s32 1, %s39
      %s70 = ssub.s32 %s68, %s69
      %p71 = scmp.eq.s32.totalorder %s70, 0
      %s73 = sadd.s32 %s72, 1
      %s74 = scalar_select %p71, %s72, %s73
      %p77 = pneg %p71
      %p78 = scmp.eq.s32.totalorder %s20, 1
      %p79 = por %p77, %p78
      %p80 = scmp.ne.s32.totalorder %s72, %s75
      %p81 = scmp.eq.s32.totalorder %s20, 0
      %p82 = por %p80, %p81
      %p83 = scmp.ne.s32.totalorder %s72, %s75
      %p84 = scmp.eq.s32.totalorder %s25, 1
      %p85 = por %p83, %p84
      %p86 = scmp.ne.s32.totalorder %s75, %s76
      %p87 = scmp.eq.s32.totalorder %s25, 0
      %p88 = por %p86, %p87
      %p89 = scmp.ne.s32.totalorder %s75, %s76
      %p90 = scmp.eq.s32.totalorder %s26, 1
      %p91 = por %p89, %p90
      %p93 = scmp.ne.s32.totalorder %s76, %s92
      %p94 = scmp.eq.s32.totalorder %s26, 0
      %p95 = por %p93, %p94
      %s96 = ssub.s32 %s27, %s39
      %p97 = scmp.eq.s32.totalorder %s96, 0
      %s99 = sadd.s32 %s98, 1
      %s100 = scalar_select %p97, %s98, %s99
      %p103 = pneg %p97
      %p104 = scmp.eq.s32.totalorder %s20, 1
      %p105 = por %p103, %p104
      %p106 = scmp.ne.s32.totalorder %s98, %s101
      %p107 = scmp.eq.s32.totalorder %s20, 0
      %p108 = por %p106, %p107
      %p109 = scmp.ne.s32.totalorder %s98, %s101
      %p110 = scmp.eq.s32.totalorder %s25, 1
      %p111 = por %p109, %p110
      %p112 = scmp.ne.s32.totalorder %s101, %s102
      %p113 = scmp.eq.s32.totalorder %s25, 0
      %p114 = por %p112, %p113
      %p115 = scmp.ne.s32.totalorder %s101, %s102
      %p116 = scmp.eq.s32.totalorder %s26, 1
      %p117 = por %p115, %p116
      %p119 = scmp.ne.s32.totalorder %s102, %s118
      %p120 = scmp.eq.s32.totalorder %s26, 0
      %p121 = por %p119, %p120
      %s122 = sadd.s32 %s27, %s28
      %s123 = sadd.s32 %s39, %s35
      %s124 = ssub.s32 %s122, %s123
      %p125 = scmp.eq.s32.totalorder %s124, 0
      %s127 = sadd.s32 %s126, 1
      %s128 = scalar_select %p125, %s126, %s127
      %p131 = pneg %p125
      %p132 = scmp.eq.s32.totalorder %s20, 1
      %p133 = por %p131, %p132
      %p134 = scmp.ne.s32.totalorder %s126, %s129
      %p135 = scmp.eq.s32.totalorder %s20, 0
      %p136 = por %p134, %p135
      %p137 = scmp.ne.s32.totalorder %s126, %s129
      %p138 = scmp.eq.s32.totalorder %s25, 1
      %p139 = por %p137, %p138
      %p140 = scmp.ne.s32.totalorder %s129, %s130
      %p141 = scmp.eq.s32.totalorder %s25, 0
      %p142 = por %p140, %p141
      %p143 = scmp.ne.s32.totalorder %s129, %s130
      %p144 = scmp.eq.s32.totalorder %s26, 1
      %p145 = por %p143, %p144
      %p147 = scmp.ne.s32.totalorder %s130, %s146
      %p148 = scmp.eq.s32.totalorder %s26, 0
      %p149 = por %p147, %p148
      %s150 = sadd.s32 %s27, %s28
      %s151 = sadd.s32 %s39, %s35
      %s152 = ssub.s32 %s150, %s151
      %p153 = scmp.eq.s32.totalorder %s152, 0
      %s155 = sadd.s32 %s154, 1
      %s156 = scalar_select %p153, %s154, %s155
      %p159 = pneg %p153
      %p160 = scmp.eq.s32.totalorder %s20, 1
      %p161 = por %p159, %p160
      %p162 = scmp.ne.s32.totalorder %s154, %s157
      %p163 = scmp.eq.s32.totalorder %s20, 0
      %p164 = por %p162, %p163
      %p165 = scmp.ne.s32.totalorder %s154, %s157
      %p166 = scmp.eq.s32.totalorder %s25, 1
      %p167 = por %p165, %p166
      %p168 = scmp.ne.s32.totalorder %s157, %s158
      %p169 = scmp.eq.s32.totalorder %s25, 0
      %p170 = por %p168, %p169
      %p171 = scmp.ne.s32.totalorder %s157, %s158
      %p172 = scmp.eq.s32.totalorder %s26, 1
      %p173 = por %p171, %p172
      %p175 = scmp.ne.s32.totalorder %s158, %s174
      %p176 = scmp.eq.s32.totalorder %s26, 0
      %p177 = por %p175, %p176
      %p178 = scmp.le.s32.totalorder 1, %s20
      %p179 = scmp.lt.s32.totalorder %s20, 3
      %p180 = pnand %p178, %p179
      %p181 = pneg %p180
      // Predicated region
      $region9: #{tpu_custom_call.1} parent=5 // pred_check
        _
      $region10: #{tpu_custom_call.1} parent=5 // pred_check_branch
        %183 = sbr.rel (%p180) target = $region12
      $region11: #{tpu_custom_call.1} parent=5 // pred_region
        %s184 = ssub.s32 %s20, 1
      $region12: #{tpu_custom_call.1} parent=5 // pred_fallthru
        _
      %p185 = scmp.lt.s32.totalorder %s20, 2
      // Predicated region
      $region13: #{tpu_custom_call.1} parent=5 // pred_check
        %p186 = pneg %p185
      $region14: #{tpu_custom_call.1} parent=5 // pred_check_branch
        %188 = sbr.rel (%p186) target = $region16
      $region15: #{tpu_custom_call.1} parent=5 // pred_region
        // Predicated region
        $region17: #{tpu_custom_call.1} parent=15 // pred_check
          %p189 = pneg %p54
        $region18: #{tpu_custom_call.1} parent=15 // pred_check_branch
          %191 = sbr.rel (%p189) target = $region20
        $region19: #{tpu_custom_call.1} parent=15 // pred_region
          %s192 = sand.u32 %s44, 1
          %s193 = scalar_lea.sflag [#allocation3], %s192
          %s194 = sand.u32 %s44, 1
          %s195 = smul.addr %s194, 8
          %s196 = scalar_lea.vmem [#allocation2], %s195
          %s198 = ssub.s32 128, 128
          %199 = vsyncadd %s193, %s198
          %s200 = sadd.s32 %s28, %s27
          %s201 = smul.addr %s200, 128
          %s202 = scalar_lea.hbm %s0, %s201
          %s204 = sshll.u32 %s196, 4
          %s205 = int_to_ptr.vmem [resolvable:$true] %s204
          %207 = dma.hbm_to_vmem [thread:$0]  %s202, 128, %s205, %s193
        $region20: #{tpu_custom_call.1} parent=15 // pred_fallthru
          _
        // Predicated region
        $region21: #{tpu_custom_call.1} parent=15 // pred_check
          %p208 = pneg %p82
        $region22: #{tpu_custom_call.1} parent=15 // pred_check_branch
          %210 = sbr.rel (%p208) target = $region24
        $region23: #{tpu_custom_call.1} parent=15 // pred_region
          %s211 = sand.u32 %s20, 1
          %s212 = scalar_lea.sflag [#allocation6], %s211
          %s213 = sand.u32 %s72, 1
          %s214 = smul.addr %s213, 8
          %s215 = scalar_lea.vmem [#allocation5], %s214
          %s216 = ssub.s32 1, %s27
          %s218 = ssub.s32 128, 128
          %219 = vsyncadd %s212, %s218
          %s220 = smul.addr %s216, 128
          %s221 = scalar_lea.hbm %s1, %s220
          %s223 = sshll.u32 %s215, 4
          %s224 = int_to_ptr.vmem [resolvable:$true] %s223
          %226 = dma.hbm_to_vmem [thread:$0]  %s221, 128, %s224, %s212
        $region24: #{tpu_custom_call.1} parent=15 // pred_fallthru
          _
        // Predicated region
        $region25: #{tpu_custom_call.1} parent=15 // pred_check
          %p227 = pneg %p108
        $region26: #{tpu_custom_call.1} parent=15 // pred_check_branch
          %229 = sbr.rel (%p227) target = $region28
        $region27: #{tpu_custom_call.1} parent=15 // pred_region
          %s230 = sand.u32 %s20, 1
          %s231 = scalar_lea.sflag [#allocation6], %s230
          %s232 = sand.u32 %s98, 1
          %s233 = smul.addr %s232, 8
          %s234 = scalar_lea.vmem [#allocation7], %s233
          %s236 = ssub.s32 128, 128
          %237 = vsyncadd %s231, %s236
          %s238 = smul.addr %s27, 128
          %s239 = scalar_lea.hbm %s2, %s238
          %s241 = sshll.u32 %s234, 4
          %s242 = int_to_ptr.vmem [resolvable:$true] %s241
          %244 = dma.hbm_to_vmem [thread:$0]  %s239, 128, %s242, %s231
        $region28: #{tpu_custom_call.1} parent=15 // pred_fallthru
          _
      $region16: #{tpu_custom_call.1} parent=5 // pred_fallthru
        _
      %p245 = scmp.le.s32.totalorder 1, %s20
      %p246 = scmp.lt.s32.totalorder %s20, 3
      %p247 = pnand %p245, %p246
      %p248 = pneg %p247
      // Predicated region
      $region29: #{tpu_custom_call.1} parent=5 // pred_check
        _
      $region30: #{tpu_custom_call.1} parent=5 // pred_check_branch
        %250 = sbr.rel (%p247) target = $region32
      $region31: #{tpu_custom_call.1} parent=5 // pred_region
        %s251 = ssub.s32 %s20, 1
        %s252 = sand.u32 %s47, 1
        %s253 = scalar_lea.sflag [#allocation3], %s252
        %s254 = sand.u32 %s47, 1
        %s255 = smul.addr %s254, 8
        %s256 = scalar_lea.vmem [#allocation2], %s255
        // Predicated region
        $region33: #{tpu_custom_call.1} parent=31 // pred_check
          %p257 = pneg %p60
        $region34: #{tpu_custom_call.1} parent=31 // pred_check_branch
          %259 = sbr.rel (%p257) target = $region36
        $region35: #{tpu_custom_call.1} parent=31 // pred_region
          %260 = dma.done %s253, 128
        $region36: #{tpu_custom_call.1} parent=31 // pred_fallthru
          _
        %s261 = sand.u32 %s25, 1
        %s262 = scalar_lea.sflag [#allocation6], %s261
        %s263 = sand.u32 %s75, 1
        %s264 = smul.addr %s263, 8
        %s265 = scalar_lea.vmem [#allocation5], %s264
        // Predicated region
        $region37: #{tpu_custom_call.1} parent=31 // pred_check
          %p266 = pneg %p88
        $region38: #{tpu_custom_call.1} parent=31 // pred_check_branch
          %268 = sbr.rel (%p266) target = $region40
        $region39: #{tpu_custom_call.1} parent=31 // pred_region
          %269 = dma.done %s262, 128
        $region40: #{tpu_custom_call.1} parent=31 // pred_fallthru
          _
        %s270 = sand.u32 %s25, 1
        %s271 = scalar_lea.sflag [#allocation6], %s270
        %s272 = sand.u32 %s101, 1
        %s273 = smul.addr %s272, 8
        %s274 = scalar_lea.vmem [#allocation7], %s273
        // Predicated region
        $region41: #{tpu_custom_call.1} parent=31 // pred_check
          %p275 = pneg %p114
        $region42: #{tpu_custom_call.1} parent=31 // pred_check_branch
          %277 = sbr.rel (%p275) target = $region44
        $region43: #{tpu_custom_call.1} parent=31 // pred_region
          %278 = dma.done %s271, 128
        $region44: #{tpu_custom_call.1} parent=31 // pred_fallthru
          _
        %s279 = sand.u32 %s47, 1
        %s280 = scalar_lea.sflag [#allocation3], %s279
        %s281 = sand.u32 %s47, 1
        %s282 = smul.addr %s281, 8
        %s283 = scalar_lea.vmem [#allocation2], %s282
        %p284 = pneg %p60
        %p285 = pneg %p57
        %s286 = sand.u32 %s25, 1
        %s287 = scalar_lea.sflag [#allocation6], %s286
        %s288 = sand.u32 %s75, 1
        %s289 = smul.addr %s288, 8
        %s290 = scalar_lea.vmem [#allocation5], %s289
        %p291 = pneg %p88
        %p292 = pneg %p85
        %s293 = sand.u32 %s25, 1
        %s294 = scalar_lea.sflag [#allocation6], %s293
        %s295 = sand.u32 %s101, 1
        %s296 = smul.addr %s295, 8
        %s297 = scalar_lea.vmem [#allocation7], %s296
        %p298 = pneg %p114
        %p299 = pneg %p111
        %p300 = pneg %p142
        %p301 = pneg %p139
        %s302 = sadd.s32 %s29, %s30
        %p303 = scmp.lt.s32.totalorder %s302, 1
        %s304 = scalar_select %p303, %s302, 1
        %s305 = smul.addr %s304, 8
        %s306 = scalar_lea.vmem %s3, %s305
        %p307 = pneg %p170
        %p308 = pneg %p167
        %s309 = sand.u32 %s157, 1
        %s310 = scalar_lea.sflag [#allocation4], %s309
        %s311 = sand.u32 %s157, 1
        %s312 = smul.addr %s311, 8
        %s313 = scalar_lea.vmem [#allocation8], %s312
        %s314 = ssub.s32 1, %s29
        %s315 = sadd.s32 %s29, %s30
        %p316 = scmp.lt.s32.totalorder %s315, 1
        %s317 = scalar_select %p316, %s315, 1
        %s318 = smul.addr %s317, 8
        %s319 = scalar_lea.vmem %s3, %s318
        %s320 = sadd.s32 %s29, %s30
        %s321 = sadd.s32 %s29, %s30
        %v323 = vld [vmem:[%s256] sm:$0xff]
        %v324 = vmul.f32 %v323, %v323
        %vm325 = vcmask 261120
        %v326 = vsel %vm325, %v324, 0.0
        %327 = vadd.xlane.f32.xlu0 %v326
        %v328 = vpop.xlane.xlu0 %327
        %v329 = vmax.f32 %v328, 1e-24
        %v330 = vrsqrt.pop %v329
        %v331 = vmul.f32 %v323, %v330
        %v332 = vld [vmem:[%s265] sm:$0xff]
        %v333 = vmul.f32 %v332, %v332
        %v334 = vsel %vm325, %v333, 0.0
        %335 = vadd.xlane.f32.xlu0 %v334
        %v336 = vpop.xlane.xlu0 %335
        %v337 = vmax.f32 %v336, 1e-24
        %v338 = vrsqrt.pop %v337
        %v339 = vmul.f32 %v332, %v338
        %v340 = vld [vmem:[%s274] sm:$0xff]
        %v341 = vmul.f32 %v340, %v340
        %v342 = vsel %vm325, %v341, 0.0
        %343 = vadd.xlane.f32.xlu0 %v342
        %v344 = vpop.xlane.xlu0 %343
        %v345 = vmax.f32 %v344, 1e-24
        %v346 = vrsqrt.pop %v345
        %v347 = vmul.f32 %v340, %v346
        %v348 = vpack.c.bf16 %v331, %v331
        %v349 = vpack.c.bf16 %v339, %v339
        %v351 = vsel %vm325, %v348, 0
        %v354 = vsel %vm325, %v349, 0
        %356 = vmatprep.subr.bf16.mxu0 0
        %357 = vmatpush1.bf16.xpose.msra.mxu0 %v354
        %358 = vmatprep.subr.bf16.mxu0 0
        %359 = vmatpush1.bf16.xpose.msra.mxu0 0
        %360 = vmatprep.subr.bf16.mxu0 0
        %361 = vmatpush1.bf16.xpose.msra.mxu0 0
        %362 = vmatprep.subr.bf16.mxu0 0
        %363 = vmatpush1.bf16.xpose.msra.mxu0 0
        %364 = vmatprep.subr.bf16.mxu0 0
        %365 = vmatpush1.bf16.xpose.msra.mxu0 0
        %366 = vmatprep.subr.bf16.mxu0 0
        %367 = vmatpush1.bf16.xpose.msra.mxu0 0
        %368 = vmatprep.subr.bf16.mxu0 0
        %369 = vmatpush1.bf16.xpose.msra.mxu0 0
        %370 = vmatprep.subr.bf16.mxu0 0
        %371 = vmatpush1.bf16.xpose.msra.mxu0 0
        %372 = vmatprep.subr.bf16.mxu0 0
        %373 = vmatpush1.bf16.xpose.msra.mxu0 0
        %374 = vmatprep.subr.bf16.mxu0 0
        %375 = vmatpush1.bf16.xpose.msra.mxu0 0
        %376 = vmatprep.subr.bf16.mxu0 0
        %377 = vmatpush1.bf16.xpose.msra.mxu0 0
        %378 = vmatprep.subr.bf16.mxu0 0
        %379 = vmatpush1.bf16.xpose.msra.mxu0 0
        %380 = vmatprep.subr.bf16.mxu0 0
        %381 = vmatpush1.bf16.xpose.msra.mxu0 0
        %382 = vmatprep.subr.bf16.mxu0 0
        %383 = vmatpush1.bf16.xpose.msra.mxu0 0
        %384 = vmatprep.subr.bf16.mxu0 0
        %385 = vmatpush1.bf16.xpose.msra.mxu0 0
        %386 = vmatprep.subr.bf16.mxu0 0
        %387 = vmatpush1.bf16.xpose.msra.mxu0 0
        %388 = vmatprep.mubr.bf16.mxu0 0
        %389 = vmatmul.mubr.bf16.gmra.mrb[0].mxu0 %v351
        %v390 = vpop.f32.mrb[0].mxu0
        %v391 = vadd.f32 0.0, %v390
        %v392 = vpop.f32.mrb[0].mxu0
        %v393 = vpop.f32.mrb[0].mxu0
        %v394 = vpop.f32.mrb[0].mxu0
        %395 = vdwg.mxu0
        %v396 = vmul.f32 %v391, 2.0
        %v397 = vpack.c.bf16 %v347, %v347
        %v399 = vsel %vm325, %v397, 0
        %401 = vmatprep.subr.bf16.mxu0 0
        %402 = vmatpush1.bf16.xpose.msra.mxu0 %v399
        %403 = vmatprep.subr.bf16.mxu0 0
        %404 = vmatpush1.bf16.xpose.msra.mxu0 0
        %405 = vmatprep.subr.bf16.mxu0 0
        %406 = vmatpush1.bf16.xpose.msra.mxu0 0
        %407 = vmatprep.subr.bf16.mxu0 0
        %408 = vmatpush1.bf16.xpose.msra.mxu0 0
        %409 = vmatprep.subr.bf16.mxu0 0
        %410 = vmatpush1.bf16.xpose.msra.mxu0 0
        %411 = vmatprep.subr.bf16.mxu0 0
        %412 = vmatpush1.bf16.xpose.msra.mxu0 0
        %413 = vmatprep.subr.bf16.mxu0 0
        %414 = vmatpush1.bf16.xpose.msra.mxu0 0
        %415 = vmatprep.subr.bf16.mxu0 0
        %416 = vmatpush1.bf16.xpose.msra.mxu0 0
        %417 = vmatprep.subr.bf16.mxu0 0
        %418 = vmatpush1.bf16.xpose.msra.mxu0 0
        %419 = vmatprep.subr.bf16.mxu0 0
        %420 = vmatpush1.bf16.xpose.msra.mxu0 0
        %421 = vmatprep.subr.bf16.mxu0 0
        %422 = vmatpush1.bf16.xpose.msra.mxu0 0
        %423 = vmatprep.subr.bf16.mxu0 0
        %424 = vmatpush1.bf16.xpose.msra.mxu0 0
        %425 = vmatprep.subr.bf16.mxu0 0
        %426 = vmatpush1.bf16.xpose.msra.mxu0 0
        %427 = vmatprep.subr.bf16.mxu0 0
        %428 = vmatpush1.bf16.xpose.msra.mxu0 0
        %429 = vmatprep.subr.bf16.mxu0 0
        %430 = vmatpush1.bf16.xpose.msra.mxu0 0
        %431 = vmatprep.subr.bf16.mxu0 0
        %432 = vmatpush1.bf16.xpose.msra.mxu0 0
        %433 = vmatprep.mubr.bf16.mxu0 0
        %434 = vmatmul.mubr.bf16.gmra.mrb[0].mxu0 %v351
        %v435 = vpop.f32.mrb[0].mxu0
        %v436 = vadd.f32 0.0, %v435
        %v437 = vpop.f32.mrb[0].mxu0
        %v438 = vpop.f32.mrb[0].mxu0
        %v439 = vpop.f32.mrb[0].mxu0
        %440 = vdwg.mxu0
        %v441 = vmul.f32 %v436, 2.0
        %v442 = vlaneseq
        %v443 = vshrl.u32 %v442, 7
        %v444 = vlaneseq
        %v445 = vand.u32 %v444, 127
        %s446 = smul.u32 %s30, 8
        %v447 = vstv %s446
        %v448 = vadd.s32 %v447, %v443
        %vm449 = vcmp.lt.s32.totalorder %v445, %v448
        %451 = vrot.lane.b32.xlu0 %v441, 127
        %v452 = vpop.permute.xlu0 %451
        %v454 = vsel %vm449, %v441, %v452
        %vm455 = vcmask 64512
        %v456 = vsel %vm455, %v396, -inf
        %457 = vmax.xlane.f32.xlu0 %v456
        %v458 = vpop.xlane.xlu0 %457
        %vm459 = vcmask 56320
        %v460 = vsel %vm459, %v454, -inf
        %461 = vmax.xlane.f32.xlu0 %v460
        %v462 = vpop.xlane.xlu0 %461
        %v463 = vmax.f32 %v458, %v462
        %v464 = vsub.f32 %v396, %v463
        %v465 = vmul.f32 %v464, 1.442695
        %v466 = vpow.pop %v465
        %v467 = vsel %vm455, %v466, 0.0
        %468 = vadd.xlane.f32.xlu0 %v467
        %v469 = vpop.xlane.xlu0 %468
        %v470 = vsub.f32 %v454, %v463
        %v471 = vmul.f32 %v470, 1.442695
        %v472 = vpow.pop %v471
        %v473 = vsel %vm459, %v472, 0.0
        %474 = vadd.xlane.f32.xlu0 %v473
        %v475 = vpop.xlane.xlu0 %474
        %v476 = vadd.f32 %v469, %v475
        %v477 = vlog2.pop %v476
        %v478 = vmul.f32 %v477, 0.6931472
        %v479 = vadd.f32 %v463, %v478
        %s480 = scalar_lea.vmem %s265, %s446 [#allocation5]
        %v481 = vld [vmem:[%s480] sm:$0xff]
        %v482 = vmul.f32 %v481, %v481
        %v483 = vsel %vm325, %v482, 0.0
        %484 = vadd.xlane.f32.xlu0 %v483
        %v485 = vpop.xlane.xlu0 %484
        %v486 = vmax.f32 %v485, 1e-24
        %v487 = vrsqrt.pop %v486
        %v488 = vmul.f32 %v481, %v487
        %v489 = vmul.f32 %v331, %v488
        %v490 = vsel %vm325, %v489, 0.0
        %491 = vadd.xlane.f32.xlu0 %v490
        %v492 = vpop.xlane.xlu0 %491
        %v493 = vmul.f32 %v492, 2.0
        %v494 = vsub.f32 %v479, %v493
        %vm495 = vcmask 7168
        %496 = vst.msk [vmem:[%s319] sm:$0xff] %vm495, %v494
        %497 = vst.msk [vmem:[%s313] sm:$0xff] %vm455, %v396
        %499 = vrot.lane.b32.xlu0 %v454, 8
        %v500 = vpop.permute.xlu0 %499
        %vm502 = vcmask 121920
        %503 = vst.msk [vmem:[%s313] sm:$0xff] %vm502, %v500
        %s504 = sadd.s32 %s29, %s30
        %p505 = scmp.lt.s32.totalorder %s504, 1
        %s506 = scalar_select %p505, %s504, 1
        %s507 = smul.addr %s506, 8
        %s508 = scalar_lea.vmem %s3, %s507
        %s509 = sand.u32 %s157, 1
        %s510 = scalar_lea.sflag [#allocation4], %s509
        %s511 = sand.u32 %s157, 1
        %s512 = smul.addr %s511, 8
        %s513 = scalar_lea.vmem [#allocation8], %s512
        // Predicated region
        $region45: #{tpu_custom_call.1} parent=31 // pred_check
          %p514 = pneg %p139
        $region46: #{tpu_custom_call.1} parent=31 // pred_check_branch
          %516 = sbr.rel (%p514) target = $region48
        $region47: #{tpu_custom_call.1} parent=31 // pred_region
          %s517 = sadd.s32 %s29, %s30
        $region48: #{tpu_custom_call.1} parent=31 // pred_fallthru
          _
        // Predicated region
        $region49: #{tpu_custom_call.1} parent=31 // pred_check
          %p518 = pneg %p167
        $region50: #{tpu_custom_call.1} parent=31 // pred_check_branch
          %520 = sbr.rel (%p518) target = $region52
        $region51: #{tpu_custom_call.1} parent=31 // pred_region
          %s521 = sadd.s32 %s29, %s30
          %s523 = ssub.s32 128, 128
          %524 = vsyncadd %s510, %s523
          %s525 = smul.addr %s521, 128
          %s526 = scalar_lea.hbm %s4, %s525
          %s528 = sshll.u32 %s513, 4
          %s529 = int_to_ptr.vmem [resolvable:$true] %s528
          %531 = dma.vmem_to_hbm [thread:$0]  %s529, 128, %s526, %s510
        $region52: #{tpu_custom_call.1} parent=31 // pred_fallthru
          _
      $region32: #{tpu_custom_call.1} parent=5 // pred_fallthru
        _
      %p532 = scmp.le.s32.totalorder 2, %s20
      // Predicated region
      $region53: #{tpu_custom_call.1} parent=5 // pred_check
        %p533 = pneg %p532
      $region54: #{tpu_custom_call.1} parent=5 // pred_check_branch
        %535 = sbr.rel (%p533) target = $region56
      $region55: #{tpu_custom_call.1} parent=5 // pred_region
        %s536 = ssub.s32 %s20, 2
        // Predicated region
        $region57: #{tpu_custom_call.1} parent=55 // pred_check
          %p537 = pneg %p145
        $region58: #{tpu_custom_call.1} parent=55 // pred_check_branch
          %539 = sbr.rel (%p537) target = $region60
        $region59: #{tpu_custom_call.1} parent=55 // pred_region
          %s540 = sadd.s32 %s31, %s32
          %p541 = scmp.lt.s32.totalorder %s540, 1
          %s542 = scalar_select %p541, %s540, 1
          %s543 = smul.addr %s542, 8
          %s544 = scalar_lea.vmem %s3, %s543
        $region60: #{tpu_custom_call.1} parent=55 // pred_fallthru
          _
        // Predicated region
        $region61: #{tpu_custom_call.1} parent=55 // pred_check
          %p545 = pneg %p173
        $region62: #{tpu_custom_call.1} parent=55 // pred_check_branch
          %547 = sbr.rel (%p545) target = $region64
        $region63: #{tpu_custom_call.1} parent=55 // pred_region
          %s548 = sand.u32 %s158, 1
          %s549 = scalar_lea.sflag [#allocation4], %s548
          %s550 = sand.u32 %s158, 1
          %s551 = smul.addr %s550, 8
          %s552 = scalar_lea.vmem [#allocation8], %s551
          %553 = dma.done %s549, 128
        $region64: #{tpu_custom_call.1} parent=55 // pred_fallthru
          _
      $region56: #{tpu_custom_call.1} parent=5 // pred_fallthru
        _
    $region6: #{tpu_custom_call.1} parent=1 // loop_footer
      %s24 = sadd.s32 1, %s20
    $region7: #{tpu_custom_call.1} parent=1 // loop_footer_branch
      %19 = sbr.rel target = $region3
    $region8: #{tpu_custom_call.1} parent=1 // loop_exit
      _
    %554 = vsyncpa [#allocation3], 1
    %s555 = scalar_lea.sflag [#allocation3], 1
    %556 = vsyncpa %s555, 1
    %557 = vsyncpa [#allocation6], 1
    %s558 = scalar_lea.sflag [#allocation6], 1
    %559 = vsyncpa %s558, 1
    %560 = vsyncpa [#allocation4], 1
    %s561 = scalar_lea.sflag [#allocation4], 1
    %562 = vsyncpa %s561, 1

</llo_original>
